<compile_context>
chip_gen: v6e
topology: v6e:2x2x1
jax: 0.10.0
libtpu: 0.0.40
codegen_flags: <defaults>
</compile_context>

<pallas_src>
import jax
import jax.numpy as jnp
from jax import lax
from jax.experimental import pallas as pl
from jax.experimental.pallas import tpu as pltpu  # noqa: F401  (TPU backend)


def mlp_kernel(x_ref, w1_ref, b1_ref, w2_ref, b2_ref, o_ref):
    # x:  (B, D_in)    w1: (H, D_in)    b1: (1, H)
    # w2: (D_out, H)   b2: (1, D_out)   o:  (B, D_out)
    # Contract against PyTorch-layout weights directly (x @ W.T) on the MXU.
    x = x_ref[...]
    h = lax.dot_general(
        x, w1_ref[...],
        dimension_numbers=(((1,), (1,)), ((), ())),   # x dim1 . w1 dim1
        preferred_element_type=jnp.float32,
    ) + b1_ref[...]
    h = jnp.maximum(h, 0.0)                           # ReLU on the VPU (f32)
    y = lax.dot_general(
        h, w2_ref[...],
        dimension_numbers=(((1,), (1,)), ((), ())),   # h dim1 . w2 dim1
        preferred_element_type=jnp.float32,
    ) + b2_ref[...]
    o_ref[...] = y.astype(o_ref.dtype)


def _mlp_pallas(x, w1, b1_2d, w2, b2_2d):
    B, D_in = x.shape
    H = w1.shape[0]
    D_out = w2.shape[0]

    full = lambda shape: pl.BlockSpec(shape, lambda: (0,) * len(shape))

    flops = 2 * B * (D_in * H + H * D_out)
    bytes_accessed = 4 * (
        B * D_in + H * D_in + H + D_out * H + D_out + B * D_out
    )

    return pl.pallas_call(
        mlp_kernel,
        out_shape=jax.ShapeDtypeStruct((B, D_out), jnp.float32),
        grid=(),  # single invocation; whole problem (<64 KiB) sits in VMEM
        in_specs=[
            full((B, D_in)),
            full((H, D_in)),      # PyTorch layout, no transpose
            full((1, H)),
            full((D_out, H)),     # PyTorch layout, no transpose
            full((1, D_out)),
        ],
        out_specs=full((B, D_out)),
        cost_estimate=pl.CostEstimate(
            flops=flops, transcendentals=0, bytes_accessed=bytes_accessed
        ),
    )(x, w1, b1_2d, w2, b2_2d)


@jax.jit
def torch_wrapper_forward(x, w1, b1, w2, b2):
    """Pallas equivalent of TorchWrapper(backbone)(x) with the MLP backbone.

    x  : (B, D_in)  float32
    w1 : (H, D_in)  float32   (PyTorch nn.Linear weight layout)
    b1 : (H,)       float32
    w2 : (D_out, H) float32
    b2 : (D_out,)   float32
    returns (B, D_out) float32
    """
    H = w1.shape[0]
    D_out = w2.shape[0]
    # Bias reshape is metadata-only and folded under this jit; no per-call
    # glue ops reach the hot path.
    return _mlp_pallas(x, w1, b1.reshape(1, H), w2, b2.reshape(1, D_out))


def reference_forward(x, w1, b1, w2, b2):
    h = jnp.maximum(x @ w1.T + b1, 0.0)
    return h @ w2.T + b2


if __name__ == "__main__":
    key = jax.random.PRNGKey(0)
    k_x, k_w1, k_b1, k_w2, k_b2 = jax.random.split(key, 5)

    B, D_in, H, D_out = 8, 32, 64, 16

    x = jax.random.normal(k_x, (B, D_in), dtype=jnp.float32)
    # Deterministic parameter init (synthetic, not a checkpoint load).
    w1 = jax.random.normal(k_w1, (H, D_in), dtype=jnp.float32) * 0.1
    b1 = jax.random.normal(k_b1, (H,), dtype=jnp.float32) * 0.1
    w2 = jax.random.normal(k_w2, (D_out, H), dtype=jnp.float32) * 0.1
    b2 = jax.random.normal(k_b2, (D_out,), dtype=jnp.float32) * 0.1

    out = torch_wrapper_forward(x, w1, b1, w2, b2)
    out = jax.block_until_ready(out)

    ref = reference_forward(x, w1, b1, w2, b2)
    assert out.shape == (B, D_out)
    assert jnp.allclose(out, ref, atol=1e-4, rtol=1e-4), "mismatch vs reference"

    print("KERNEL_OK")
</pallas_src>

<mosaic_0001>
module attributes {stable_mosaic.version = 11 : i64} {
  func.func @mlp_kernel(%arg0: memref<8x32xf32, #tpu.memory_space<vmem>>, %arg1: memref<64x32xf32, #tpu.memory_space<vmem>>, %arg2: memref<1x64xf32, #tpu.memory_space<vmem>>, %arg3: memref<16x64xf32, #tpu.memory_space<vmem>>, %arg4: memref<1x16xf32, #tpu.memory_space<vmem>>, %arg5: memref<8x16xf32, #tpu.memory_space<vmem>>) attributes {dimension_semantics = [], scalar_prefetch = 0 : i64, scratch_operands = 0 : i64, tpu.core_type = #tpu.core_type<tc>} {
    %c0 = arith.constant 0 : index
    %c0_0 = arith.constant 0 : index
    %0 = vector.load %arg0[%c0, %c0_0] : memref<8x32xf32, #tpu.memory_space<vmem>>, vector<8x32xf32>
    %c0_1 = arith.constant 0 : index
    %c0_2 = arith.constant 0 : index
    %1 = vector.load %arg1[%c0_1, %c0_2] : memref<64x32xf32, #tpu.memory_space<vmem>>, vector<64x32xf32>
    %cst = arith.constant dense<0.000000e+00> : vector<8x64xf32>
    %2 = tpu.matmul %0, %1, %cst {dimension_numbers = #tpu.dot_dimension_numbers<[1], [1], [0], [0], [0, 0, 1, 0], [], []>} : vector<8x32xf32>, vector<64x32xf32>, vector<8x64xf32> -> vector<8x64xf32>
    %c0_3 = arith.constant 0 : index
    %c0_4 = arith.constant 0 : index
    %3 = vector.load %arg2[%c0_3, %c0_4] : memref<1x64xf32, #tpu.memory_space<vmem>>, vector<1x64xf32>
    %4 = vector.broadcast %3 : vector<1x64xf32> to vector<8x64xf32>
    %5 = arith.addf %2, %4 : vector<8x64xf32>
    %cst_5 = arith.constant 0.000000e+00 : f32
    %6 = vector.broadcast %cst_5 : f32 to vector<8x64xf32>
    %7 = arith.maximumf %5, %6 : vector<8x64xf32>
    %c0_6 = arith.constant 0 : index
    %c0_7 = arith.constant 0 : index
    %8 = vector.load %arg3[%c0_6, %c0_7] : memref<16x64xf32, #tpu.memory_space<vmem>>, vector<16x64xf32>
    %cst_8 = arith.constant dense<0.000000e+00> : vector<8x16xf32>
    %9 = tpu.matmul %7, %8, %cst_8 {dimension_numbers = #tpu.dot_dimension_numbers<[1], [1], [0], [0], [0, 0, 1, 0], [], []>} : vector<8x64xf32>, vector<16x64xf32>, vector<8x16xf32> -> vector<8x16xf32>
    %c0_9 = arith.constant 0 : index
    %c0_10 = arith.constant 0 : index
    %10 = vector.load %arg4[%c0_9, %c0_10] : memref<1x16xf32, #tpu.memory_space<vmem>>, vector<1x16xf32>
    %11 = vector.broadcast %10 : vector<1x16xf32> to vector<8x16xf32>
    %12 = arith.addf %9, %11 : vector<8x16xf32>
    %c0_11 = arith.constant 0 : index
    %c0_12 = arith.constant 0 : index
    %13 = vector.load %arg5[%c0_11, %c0_12] : memref<8x16xf32, #tpu.memory_space<vmem>>, vector<8x16xf32>
    tpu.vector_store %arg5[%c0_11, %c0_12], %12 {strides = array<i32>} : memref<8x16xf32, #tpu.memory_space<vmem>>, vector<8x16xf32>,
    return
  }
}

</mosaic_0001>

<llo_original>
// kernel: torch_wrapper_forward.1
$region0: #{torch_wrapper_forward.1}
  #allocation0 [shape = 'u32[]', space=smem, size = 0x4, offset = 0x4, fixed_abs, tag = 'smem constant byte address 0x4 - core index']
  #allocation1 [shape = 'u32[144,128]{1,0:T(1,128)}', space=vmem, size = 0x12000, scoped, tag = 'internal scratch']
  %s0 = inlined_call_operand.vmem [shape: f32[8,32], index: 0, kind: input, shape index: {}]
  %s1 = inlined_call_operand.vmem [shape: f32[64,32], index: 1, kind: input, shape index: {}]
  %s2 = inlined_call_operand.vmem [shape: f32[1,64], index: 2, kind: input, shape index: {}]
  %s3 = inlined_call_operand.vmem [shape: f32[16,64], index: 3, kind: input, shape index: {}]
  %s4 = inlined_call_operand.vmem [shape: f32[1,16], index: 4, kind: input, shape index: {}]
  %s5 = inlined_call_operand.hbm [shape: f32[8,16], index: 5, kind: output, shape index: {}]
  %s6 = sld [smem:[#allocation0]]
  $region30: #{torch_wrapper_forward.1} parent=0
    _
  %s8 = ssub.s32 1, %s6
  %s9 = scalar_select 0, %s8, %s6
  $region1: #{torch_wrapper_forward.1} parent=0
    #allocation2 [shape = 'u8[4096]{0}', space=vmem, size = 0x1000, scoped, tag = 'output window, operand 0, single buffered']
    #allocation3 [shape = 's32[1]{0}', space=sflag, size = 0x4, scoped, tag = 'scoped memory for torch_wrapper_forward.1']
    %10 = vsyncpa [#allocation3], 0
    // Predicated region
    $region2: #{torch_wrapper_forward.1} parent=1 // pred_check
      _
    $region3: #{torch_wrapper_forward.1} parent=1 // pred_check_branch
      %12 = sbr.rel (0) target = $region5
    $region4: #{torch_wrapper_forward.1} parent=1 // pred_region
      _
    $region5: #{torch_wrapper_forward.1} parent=1 // pred_fallthru
      _
    // Predicated region
    $region6: #{torch_wrapper_forward.1} parent=1 // pred_check
      _
    $region7: #{torch_wrapper_forward.1} parent=1 // pred_check_branch
      %14 = sbr.rel (0) target = $region9
    $region8: #{torch_wrapper_forward.1} parent=1 // pred_region
      _
    $region9: #{torch_wrapper_forward.1} parent=1 // pred_fallthru
      _
    // Predicated region
    $region10: #{torch_wrapper_forward.1} parent=1 // pred_check
      _
    $region11: #{torch_wrapper_forward.1} parent=1 // pred_check_branch
      %16 = sbr.rel (0) target = $region13
    $region12: #{torch_wrapper_forward.1} parent=1 // pred_region
      _
    $region13: #{torch_wrapper_forward.1} parent=1 // pred_fallthru
      _
    // Predicated region
    $region14: #{torch_wrapper_forward.1} parent=1 // pred_check
      _
    $region15: #{torch_wrapper_forward.1} parent=1 // pred_check_branch
      %18 = sbr.rel (0) target = $region17
    $region16: #{torch_wrapper_forward.1} parent=1 // pred_region
      _
    $region17: #{torch_wrapper_forward.1} parent=1 // pred_fallthru
      _
    // Predicated region
    $region18: #{torch_wrapper_forward.1} parent=1 // pred_check
      _
    $region19: #{torch_wrapper_forward.1} parent=1 // pred_check_branch
      %20 = sbr.rel (0) target = $region21
    $region20: #{torch_wrapper_forward.1} parent=1 // pred_region
      _
    $region21: #{torch_wrapper_forward.1} parent=1 // pred_fallthru
      _
    %v21 = vld [vmem:[%s0] sm:$0xff]
    %v22 = vld [vmem:[%s1] sm:$0xff]
    %v23 = vld [vmem:[%s1 + $0x8] sm:$0xff]
    %v24 = vld [vmem:[%s1 + $0x10] sm:$0xff]
    %v25 = vld [vmem:[%s1 + $0x18] sm:$0xff]
    %v26 = vld [vmem:[%s1 + $0x20] sm:$0xff]
    %v27 = vld [vmem:[%s1 + $0x28] sm:$0xff]
    %v28 = vld [vmem:[%s1 + $0x30] sm:$0xff]
    %v29 = vld [vmem:[%s1 + $0x38] sm:$0xff]
    %v30 = vld [vmem:[%s2] sm:$0x1]
    %v32 = vlaneseq
    %v33 = vshrl.u32 %v32, 7
    %v34 = vsub.s32 0, %v33
    %v35 = vrot.slane %v30, %v34
    %vm37 = vcmask 261120
    %v39 = vsel %vm37, %v21, 0
    %v42 = vsel %vm37, %v22, 0
    %v45 = vsel %vm37, %v23, 0
    %v48 = vsel %vm37, %v24, 0
    %v51 = vsel %vm37, %v25, 0
    %v54 = vsel %vm37, %v26, 0
    %v57 = vsel %vm37, %v27, 0
    %v60 = vsel %vm37, %v28, 0
    %v63 = vsel %vm37, %v29, 0
    %65 = vmatprep.subr.mxu0 0.0
    %66 = vmatpush1.xpose.msra.mxu0 0.0
    %67 = vmatprep.subr.mxu0 0.0
    %68 = vmatpush1.xpose.msra.mxu0 0.0
    %69 = vmatprep.subr.mxu0 0.0
    %70 = vmatpush1.xpose.msra.mxu0 0.0
    %71 = vmatprep.subr.mxu0 0.0
    %72 = vmatpush1.xpose.msra.mxu0 0.0
    %73 = vmatprep.subr.mxu0 0.0
    %74 = vmatpush1.xpose.msra.mxu0 0.0
    %75 = vmatprep.subr.mxu0 0.0
    %76 = vmatpush1.xpose.msra.mxu0 0.0
    %77 = vmatprep.subr.mxu0 0.0
    %78 = vmatpush1.xpose.msra.mxu0 0.0
    %79 = vmatprep.subr.mxu0 0.0
    %80 = vmatpush1.xpose.msra.mxu0 0.0
    %81 = vmatprep.subr.mxu0 0.0
    %82 = vmatpush1.xpose.msra.mxu0 %v63
    %83 = vmatprep.subr.mxu0 0.0
    %84 = vmatpush1.xpose.msra.mxu0 %v60
    %85 = vmatprep.subr.mxu0 0.0
    %86 = vmatpush1.xpose.msra.mxu0 %v57
    %87 = vmatprep.subr.mxu0 0.0
    %88 = vmatpush1.xpose.msra.mxu0 %v54
    %89 = vmatprep.subr.mxu0 0.0
    %90 = vmatpush1.xpose.msra.mxu0 %v51
    %91 = vmatprep.subr.mxu0 0.0
    %92 = vmatpush1.xpose.msra.mxu0 %v48
    %93 = vmatprep.subr.mxu0 0.0
    %94 = vmatpush1.xpose.msra.mxu0 %v45
    %95 = vmatprep.subr.mxu0 0.0
    %96 = vmatpush1.xpose.msra.mxu0 %v42
    %97 = vmatprep.subr.mxu0 0.0
    %98 = vmatpush2.xpose.msra.mxu0 0.0
    %99 = vmatprep.subr.mxu0 0.0
    %100 = vmatpush2.xpose.msra.mxu0 0.0
    %101 = vmatprep.subr.mxu0 0.0
    %102 = vmatpush2.xpose.msra.mxu0 0.0
    %103 = vmatprep.subr.mxu0 0.0
    %104 = vmatpush2.xpose.msra.mxu0 0.0
    %105 = vmatprep.subr.mxu0 0.0
    %106 = vmatpush2.xpose.msra.mxu0 0.0
    %107 = vmatprep.subr.mxu0 0.0
    %108 = vmatpush2.xpose.msra.mxu0 0.0
    %109 = vmatprep.subr.mxu0 0.0
    %110 = vmatpush2.xpose.msra.mxu0 0.0
    %111 = vmatprep.subr.mxu0 0.0
    %112 = vmatpush2.xpose.msra.mxu0 0.0
    %113 = vmatprep.subr.mxu0 0.0
    %114 = vmatpush2.xpose.msra.mxu0 0.0
    %115 = vmatprep.subr.mxu0 0.0
    %116 = vmatpush2.xpose.msra.mxu0 0.0
    %117 = vmatprep.subr.mxu0 0.0
    %118 = vmatpush2.xpose.msra.mxu0 0.0
    %119 = vmatprep.subr.mxu0 0.0
    %120 = vmatpush2.xpose.msra.mxu0 0.0
    %121 = vmatprep.subr.mxu0 0.0
    %122 = vmatpush2.xpose.msra.mxu0 0.0
    %123 = vmatprep.subr.mxu0 0.0
    %124 = vmatpush2.xpose.msra.mxu0 0.0
    %125 = vmatprep.subr.mxu0 0.0
    %126 = vmatpush2.xpose.msra.mxu0 0.0
    %127 = vmatprep.subr.mxu0 0.0
    %128 = vmatpush2.xpose.msra.mxu0 0.0
    %129 = vmatprep.mubr.f32.mxu0 0.0
    %130 = vmatmul.mubr.f32.gmra.mxu0 %v39
    %v131 = vpop.f32.mrf.mxu0
    %v132 = vadd.f32 %v35, %v131
    %v133 = vpop.f32.mrf.mxu0
    %134 = vdwg.mxu0
    %v135 = vmax.f32 %v132, 0.0
    %v136 = vld [vmem:[%s3] sm:$0xff]
    %v137 = vld [vmem:[%s3 + $0x8] sm:$0xff]
    %v138 = vld [vmem:[%s4] sm:$0x1]
    %v140 = vlaneseq
    %v141 = vshrl.u32 %v140, 7
    %v142 = vsub.s32 0, %v141
    %v143 = vrot.slane %v138, %v142
    %vm145 = vcmask 523264
    %v147 = vsel %vm145, %v135, 0
    %v150 = vsel %vm145, %v136, 0
    %v153 = vsel %vm145, %v137, 0
    %155 = vmatprep.subr.mxu0 0.0
    %156 = vmatpush1.xpose.msra.mxu0 0.0
    %157 = vmatprep.subr.mxu0 0.0
    %158 = vmatpush1.xpose.msra.mxu0 0.0
    %159 = vmatprep.subr.mxu0 0.0
    %160 = vmatpush1.xpose.msra.mxu0 0.0
    %161 = vmatprep.subr.mxu0 0.0
    %162 = vmatpush1.xpose.msra.mxu0 0.0
    %163 = vmatprep.subr.mxu0 0.0
    %164 = vmatpush1.xpose.msra.mxu0 0.0
    %165 = vmatprep.subr.mxu0 0.0
    %166 = vmatpush1.xpose.msra.mxu0 0.0
    %167 = vmatprep.subr.mxu0 0.0
    %168 = vmatpush1.xpose.msra.mxu0 0.0
    %169 = vmatprep.subr.mxu0 0.0
    %170 = vmatpush1.xpose.msra.mxu0 0.0
    %171 = vmatprep.subr.mxu0 0.0
    %172 = vmatpush1.xpose.msra.mxu0 0.0
    %173 = vmatprep.subr.mxu0 0.0
    %174 = vmatpush1.xpose.msra.mxu0 0.0
    %175 = vmatprep.subr.mxu0 0.0
    %176 = vmatpush1.xpose.msra.mxu0 0.0
    %177 = vmatprep.subr.mxu0 0.0
    %178 = vmatpush1.xpose.msra.mxu0 0.0
    %179 = vmatprep.subr.mxu0 0.0
    %180 = vmatpush1.xpose.msra.mxu0 0.0
    %181 = vmatprep.subr.mxu0 0.0
    %182 = vmatpush1.xpose.msra.mxu0 0.0
    %183 = vmatprep.subr.mxu0 0.0
    %184 = vmatpush1.xpose.msra.mxu0 %v153
    %185 = vmatprep.subr.mxu0 0.0
    %186 = vmatpush1.xpose.msra.mxu0 %v150
    %187 = vmatprep.subr.mxu0 0.0
    %188 = vmatpush2.xpose.msra.mxu0 0.0
    %189 = vmatprep.subr.mxu0 0.0
    %190 = vmatpush2.xpose.msra.mxu0 0.0
    %191 = vmatprep.subr.mxu0 0.0
    %192 = vmatpush2.xpose.msra.mxu0 0.0
    %193 = vmatprep.subr.mxu0 0.0
    %194 = vmatpush2.xpose.msra.mxu0 0.0
    %195 = vmatprep.subr.mxu0 0.0
    %196 = vmatpush2.xpose.msra.mxu0 0.0
    %197 = vmatprep.subr.mxu0 0.0
    %198 = vmatpush2.xpose.msra.mxu0 0.0
    %199 = vmatprep.subr.mxu0 0.0
    %200 = vmatpush2.xpose.msra.mxu0 0.0
    %201 = vmatprep.subr.mxu0 0.0
    %202 = vmatpush2.xpose.msra.mxu0 0.0
    %203 = vmatprep.subr.mxu0 0.0
    %204 = vmatpush2.xpose.msra.mxu0 0.0
    %205 = vmatprep.subr.mxu0 0.0
    %206 = vmatpush2.xpose.msra.mxu0 0.0
    %207 = vmatprep.subr.mxu0 0.0
    %208 = vmatpush2.xpose.msra.mxu0 0.0
    %209 = vmatprep.subr.mxu0 0.0
    %210 = vmatpush2.xpose.msra.mxu0 0.0
    %211 = vmatprep.subr.mxu0 0.0
    %212 = vmatpush2.xpose.msra.mxu0 0.0
    %213 = vmatprep.subr.mxu0 0.0
    %214 = vmatpush2.xpose.msra.mxu0 0.0
    %215 = vmatprep.subr.mxu0 0.0
    %216 = vmatpush2.xpose.msra.mxu0 0.0
    %217 = vmatprep.subr.mxu0 0.0
    %218 = vmatpush2.xpose.msra.mxu0 0.0
    %219 = vmatprep.mubr.f32.mxu0 0.0
    %220 = vmatmul.mubr.f32.gmra.mxu0 %v147
    %v221 = vpop.f32.mrf.mxu0
    %v222 = vadd.f32 %v143, %v221
    %v223 = vpop.f32.mrf.mxu0
    %224 = vdwg.mxu0
    %vm225 = vcmask 130048
    %226 = vst.msk [vmem:[#allocation2] sm:$0xff] %vm225, %v222
    // Predicated region
    $region22: #{torch_wrapper_forward.1} parent=1 // pred_check
      _
    $region23: #{torch_wrapper_forward.1} parent=1 // pred_check_branch
      %228 = sbr.rel (0) target = $region25
    $region24: #{torch_wrapper_forward.1} parent=1 // pred_region
      %s230 = ssub.s32 128, 128
      %231 = vsyncadd [#allocation3], %s230
      %s233 = sshll.u32 [#allocation2], 4
      %s234 = int_to_ptr.vmem [resolvable:$true] %s233
      %236 = dma.vmem_to_hbm [thread:$0]  %s234, 128, %s5, [#allocation3]
    $region25: #{torch_wrapper_forward.1} parent=1 // pred_fallthru
      _
    // Predicated region
    $region26: #{torch_wrapper_forward.1} parent=1 // pred_check
      _
    $region27: #{torch_wrapper_forward.1} parent=1 // pred_check_branch
      %238 = sbr.rel (0) target = $region29
    $region28: #{torch_wrapper_forward.1} parent=1 // pred_region
      %239 = dma.done [#allocation3], 128
    $region29: #{torch_wrapper_forward.1} parent=1 // pred_fallthru
      _
    %240 = vsyncpa [#allocation3], 1

</llo_original>
